<compile_context>
chip_gen: v7x
topology: tpu7x:2x2x1
jax: 0.10.0
libtpu: 0.0.40
codegen_flags: <defaults>
</compile_context>

<pallas_src>
import functools

import jax
import jax.numpy as jnp
from jax import lax
from jax.experimental import pallas as pl
from jax.experimental.pallas import tpu as pltpu


def _round_up(x, m):
    return ((x + m - 1) // m) * m


def policy_kernel(x_ref, w1_ref, b1_ref, wh_ref, bh_ref, out_ref, *, num_outputs):
    # Hidden layer: linear1 + ReLU (f32 accumulate on MXU, f32 epilogue).
    x = x_ref[...]                                                # (TB, In)
    h = jnp.dot(x, w1_ref[...], preferred_element_type=jnp.float32)
    h = jnp.maximum(h + b1_ref[...], 0.0)                         # ReLU

    # Fused heads: one lane-dense (H, P=128) matmul. Only the first 2*out
    # columns are real; slice them out BEFORE the epilogue and the store so the
    # HBM writeback is 2*out wide instead of 128 wide.
    head = 2 * num_outputs
    y = jnp.dot(h, wh_ref[...], preferred_element_type=jnp.float32)  # (TB, P)
    y2 = y[:, :head] + bh_ref[:, :head]                              # (TB, 2*out)

    # Softplus (PyTorch default beta=1, threshold=20) on the sigma half only.
    col = lax.broadcasted_iota(jnp.int32, y2.shape, dimension=1)
    is_sigma = col >= num_outputs
    sp = jnp.where(y2 > 20.0, y2, jnp.log1p(jnp.exp(jnp.minimum(y2, 20.0))))
    out_ref[...] = jnp.where(is_sigma, sp, y2).astype(out_ref.dtype)


def init_params(key, num_inputs, hidden_size, num_outputs):
    """Deterministic init mimicking nn.Linear's U(-1/sqrt(fan_in), 1/sqrt(fan_in))."""
    ks = jax.random.split(key, 6)

    def lin(kw, kb, fan_in, fan_out):
        bound = 1.0 / jnp.sqrt(jnp.float32(fan_in))
        w = jax.random.uniform(kw, (fan_in, fan_out), jnp.float32, -bound, bound)
        b = jax.random.uniform(kb, (1, fan_out), jnp.float32, -bound, bound)
        return w, b

    w1, b1 = lin(ks[0], ks[1], num_inputs, hidden_size)
    w2, b2 = lin(ks[2], ks[3], hidden_size, num_outputs)
    w2s, b2s = lin(ks[4], ks[5], hidden_size, num_outputs)
    return {"w1": w1, "b1": b1, "w2": w2, "b2": b2, "w2_": w2s, "b2_": b2s}


def pack_params(params):
    """One-time packing of the two heads into a single lane-dense (H, P>=128)
    weight/bias so the forward pass does zero per-call packing work."""
    w1, b1 = params["w1"], params["b1"]
    w2, b2 = params["w2"], params["b2"]
    w2s, b2s = params["w2_"], params["b2_"]
    hidden, num_outputs = w2.shape
    head = 2 * num_outputs
    P = max(128, _round_up(head, 128))

    wh = jnp.zeros((hidden, P), jnp.float32)
    wh = wh.at[:, :num_outputs].set(w2).at[:, num_outputs:head].set(w2s)
    bh = jnp.zeros((1, P), jnp.float32)
    bh = bh.at[:, :num_outputs].set(b2.reshape(1, -1))
    bh = bh.at[:, num_outputs:head].set(b2s.reshape(1, -1))
    packed = {"w1": w1, "b1": b1, "wh": wh, "bh": bh}
    return packed, num_outputs


@functools.partial(jax.jit, static_argnames=("num_outputs", "block_b"))
def policy_forward(x, packed, *, num_outputs, block_b=2048):
    """x: (B, num_inputs) float32.  packed: dict from pack_params()."""
    w1, b1, wh, bh = packed["w1"], packed["b1"], packed["wh"], packed["bh"]
    B, num_inputs = x.shape
    hidden = w1.shape[1]
    P = wh.shape[1]
    head = 2 * num_outputs

    # ---- batch tiling: even grid length (>=2) so both v7x TCs get work; ----
    # ---- TB is a multiple of 8 and capped by block_b for VMEM.           ----
    B8 = _round_up(max(B, 1), 8)
    nb = max(2, pl.cdiv(B8, block_b))
    if nb % 2:
        nb += 1
    TB = _round_up(pl.cdiv(B8, nb), 8)
    B_pad = TB * nb
    x_p = x if B_pad == B else jnp.zeros((B_pad, num_inputs), x.dtype).at[:B].set(x)

    out = pl.pallas_call(
        functools.partial(policy_kernel, num_outputs=num_outputs),
        out_shape=jax.ShapeDtypeStruct((B_pad, head), jnp.float32),
        grid=(nb,),
        in_specs=[
            pl.BlockSpec((TB, num_inputs), lambda i: (i, 0)),      # x tile (pipelined)
            pl.BlockSpec((num_inputs, hidden), lambda i: (0, 0)),  # VMEM-resident weights
            pl.BlockSpec((1, hidden), lambda i: (0, 0)),
            pl.BlockSpec((hidden, P), lambda i: (0, 0)),
            pl.BlockSpec((1, P), lambda i: (0, 0)),
        ],
        out_specs=pl.BlockSpec((TB, head), lambda i: (i, 0)),      # narrow (2*out) store
        compiler_params=pltpu.CompilerParams(
            dimension_semantics=("parallel",),   # megacore sharding on v7x
            vmem_limit_bytes=32 << 20,           # actual footprint is a few MiB
        ),
    )(x_p, w1, b1, wh, bh)

    mu = out[:B, :num_outputs]
    sigma_sq = out[:B, num_outputs:head]
    return mu, sigma_sq


def reference_forward(x, p):
    h = jnp.maximum(x @ p["w1"] + p["b1"], 0.0)
    mu = h @ p["w2"] + p["b2"]
    s = h @ p["w2_"] + p["b2_"]
    sigma_sq = jnp.where(s > 20.0, s, jnp.log1p(jnp.exp(jnp.minimum(s, 20.0))))
    return mu, sigma_sq


if __name__ == "__main__":
    # Small shapes consistent with the module: batch=8 states, num_inputs=16,
    # hidden_size=32, action_space dim (num_outputs)=4.
    B, NUM_INPUTS, HIDDEN, NUM_OUTPUTS = 8, 16, 32, 4

    key = jax.random.PRNGKey(0)
    k_x, k_p, k_x2 = jax.random.split(key, 3)
    x = jax.random.normal(k_x, (B, NUM_INPUTS), jnp.float32)
    params = init_params(k_p, NUM_INPUTS, HIDDEN, NUM_OUTPUTS)
    packed, num_outputs = pack_params(params)

    mu, sigma_sq = policy_forward(x, packed, num_outputs=num_outputs)
    jax.block_until_ready((mu, sigma_sq))

    mu_ref, sigma_ref = reference_forward(x, params)
    assert mu.shape == (B, NUM_OUTPUTS) and sigma_sq.shape == (B, NUM_OUTPUTS)
    assert jnp.allclose(mu, mu_ref, atol=1e-5, rtol=1e-5)
    assert jnp.allclose(sigma_sq, sigma_ref, atol=1e-5, rtol=1e-5)
    assert bool(jnp.all(sigma_sq > 0.0))  # softplus output is strictly positive

    # Larger, non-multiple batch to exercise the batch grid + padding path.
    B2 = 1000
    x2 = jax.random.normal(k_x2, (B2, NUM_INPUTS), jnp.float32)
    mu2, sig2 = policy_forward(x2, packed, num_outputs=num_outputs)
    jax.block_until_ready((mu2, sig2))
    mu2_ref, sig2_ref = reference_forward(x2, params)
    assert mu2.shape == (B2, NUM_OUTPUTS) and sig2.shape == (B2, NUM_OUTPUTS)
    assert jnp.allclose(mu2, mu2_ref, atol=1e-5, rtol=1e-5)
    assert jnp.allclose(sig2, sig2_ref, atol=1e-5, rtol=1e-5)
    assert bool(jnp.all(sig2 > 0.0))

    print("KERNEL_OK")
</pallas_src>

<mosaic_0001>
module attributes {stable_mosaic.version = 11 : i64} {
  func.func @policy_kernel(%arg0: i32, %arg1: memref<8x16xf32, #tpu.memory_space<vmem>>, %arg2: memref<16x32xf32, #tpu.memory_space<vmem>>, %arg3: memref<1x32xf32, #tpu.memory_space<vmem>>, %arg4: memref<32x128xf32, #tpu.memory_space<vmem>>, %arg5: memref<1x128xf32, #tpu.memory_space<vmem>>, %arg6: memref<8x8xf32, #tpu.memory_space<vmem>>) attributes {dimension_semantics = [#tpu.dimension_semantics<parallel>], iteration_bounds = array<i64: 2>, scalar_prefetch = 0 : i64, scratch_operands = 0 : i64, tpu.core_type = #tpu.core_type<tc>, window_params = [{transform_indices = @transform_0, window_bounds = array<i64: 8, 16>}, {pipeline_mode = #tpu.pipeline_mode<synchronous>, transform_indices = @transform_1, window_bounds = array<i64: 16, 32>}, {pipeline_mode = #tpu.pipeline_mode<synchronous>, transform_indices = @transform_2, window_bounds = array<i64: 1, 32>}, {pipeline_mode = #tpu.pipeline_mode<synchronous>, transform_indices = @transform_3, window_bounds = array<i64: 32, 128>}, {pipeline_mode = #tpu.pipeline_mode<synchronous>, transform_indices = @transform_4, window_bounds = array<i64: 1, 128>}, {transform_indices = @transform_5, window_bounds = array<i64: 8, 8>}]} {
    %c0 = arith.constant 0 : index
    %c0_0 = arith.constant 0 : index
    %0 = vector.load %arg1[%c0, %c0_0] : memref<8x16xf32, #tpu.memory_space<vmem>>, vector<8x16xf32>
    %c0_1 = arith.constant 0 : index
    %c0_2 = arith.constant 0 : index
    %1 = vector.load %arg2[%c0_1, %c0_2] : memref<16x32xf32, #tpu.memory_space<vmem>>, vector<16x32xf32>
    %cst = arith.constant dense<0.000000e+00> : vector<8x32xf32>
    %2 = tpu.matmul %0, %1, %cst {dimension_numbers = #tpu.dot_dimension_numbers<[1], [0], [0], [1], [0, 0, 1, 1], [], []>} : vector<8x16xf32>, vector<16x32xf32>, vector<8x32xf32> -> vector<8x32xf32>
    %c0_3 = arith.constant 0 : index
    %c0_4 = arith.constant 0 : index
    %3 = vector.load %arg3[%c0_3, %c0_4] : memref<1x32xf32, #tpu.memory_space<vmem>>, vector<1x32xf32>
    %4 = vector.broadcast %3 : vector<1x32xf32> to vector<8x32xf32>
    %5 = arith.addf %2, %4 : vector<8x32xf32>
    %cst_5 = arith.constant 0.000000e+00 : f32
    %6 = vector.broadcast %cst_5 : f32 to vector<8x32xf32>
    %7 = arith.maximumf %5, %6 : vector<8x32xf32>
    %c0_6 = arith.constant 0 : index
    %c0_7 = arith.constant 0 : index
    %8 = vector.load %arg4[%c0_6, %c0_7] : memref<32x128xf32, #tpu.memory_space<vmem>>, vector<32x128xf32>
    %cst_8 = arith.constant dense<0.000000e+00> : vector<8x128xf32>
    %9 = tpu.matmul %7, %8, %cst_8 {dimension_numbers = #tpu.dot_dimension_numbers<[1], [0], [0], [1], [0, 0, 1, 1], [], []>} : vector<8x32xf32>, vector<32x128xf32>, vector<8x128xf32> -> vector<8x128xf32>
    %10 = vector.extract_strided_slice %9 {offsets = [0, 0], sizes = [8, 8], strides = [1, 1]} : vector<8x128xf32> to vector<8x8xf32>
    %c0_9 = arith.constant 0 : index
    %c0_10 = arith.constant 0 : index
    %11 = vector.load %arg5[%c0_9, %c0_10] : memref<1x128xf32, #tpu.memory_space<vmem>>, vector<1x8xf32>
    %12 = vector.broadcast %11 : vector<1x8xf32> to vector<8x8xf32>
    %13 = arith.addf %10, %12 : vector<8x8xf32>
    %14 = tpu.iota {dimensions = array<i32: 1>} : vector<8x8xi32>
    %c4_i32 = arith.constant 4 : i32
    %15 = vector.broadcast %c4_i32 : i32 to vector<8x8xi32>
    %16 = arith.cmpi sge, %14, %15 : vector<8x8xi32>
    %cst_11 = arith.constant 2.000000e+01 : f32
    %17 = vector.broadcast %cst_11 : f32 to vector<8x8xf32>
    %18 = arith.cmpf ogt, %13, %17 : vector<8x8xf32>
    %cst_12 = arith.constant 2.000000e+01 : f32
    %19 = vector.broadcast %cst_12 : f32 to vector<8x8xf32>
    %20 = arith.minimumf %13, %19 : vector<8x8xf32>
    %21 = math.exp %20 : vector<8x8xf32>
    %22 = math.log1p %21 : vector<8x8xf32>
    %23 = arith.select %18, %13, %22 : vector<8x8xi1>, vector<8x8xf32>
    %24 = arith.select %16, %23, %13 : vector<8x8xi1>, vector<8x8xf32>
    %c0_13 = arith.constant 0 : index
    %c0_14 = arith.constant 0 : index
    %25 = vector.load %arg6[%c0_13, %c0_14] : memref<8x8xf32, #tpu.memory_space<vmem>>, vector<8x8xf32>
    tpu.vector_store %arg6[%c0_13, %c0_14], %24 {strides = array<i32>} : memref<8x8xf32, #tpu.memory_space<vmem>>, vector<8x8xf32>,
    return
  }
  func.func @transform_0(%arg0: i32) -> (i32, i32) {
    %c0_i32 = arith.constant 0 : i32
    %c0_i32_0 = arith.constant 0 : i32
    return %arg0, %c0_i32 : i32, i32
  }
  func.func @transform_1(%arg0: i32) -> (i32, i32) {
    %c0_i32 = arith.constant 0 : i32
    %c0_i32_0 = arith.constant 0 : i32
    %c0_i32_1 = arith.constant 0 : i32
    return %c0_i32, %c0_i32_0 : i32, i32
  }
  func.func @transform_2(%arg0: i32) -> (i32, i32) {
    %c0_i32 = arith.constant 0 : i32
    %c0_i32_0 = arith.constant 0 : i32
    %c0_i32_1 = arith.constant 0 : i32
    return %c0_i32, %c0_i32_0 : i32, i32
  }
  func.func @transform_3(%arg0: i32) -> (i32, i32) {
    %c0_i32 = arith.constant 0 : i32
    %c0_i32_0 = arith.constant 0 : i32
    %c0_i32_1 = arith.constant 0 : i32
    return %c0_i32, %c0_i32_0 : i32, i32
  }
  func.func @transform_4(%arg0: i32) -> (i32, i32) {
    %c0_i32 = arith.constant 0 : i32
    %c0_i32_0 = arith.constant 0 : i32
    %c0_i32_1 = arith.constant 0 : i32
    return %c0_i32, %c0_i32_0 : i32, i32
  }
  func.func @transform_5(%arg0: i32) -> (i32, i32) {
    %c0_i32 = arith.constant 0 : i32
    %c0_i32_0 = arith.constant 0 : i32
    return %arg0, %c0_i32 : i32, i32
  }
}

</mosaic_0001>

<llo_original>
// kernel: policy_forward.1
$region0: #{policy_forward.1}
  #allocation0 [shape = 'u32[]', space=smem, size = 0x4, offset = 0x4, fixed_abs, tag = 'smem constant byte address 0x4 - core index']
  #allocation1 [shape = 'u32[144,128]{1,0:T(1,128)}', space=vmem, size = 0x12000, scoped, tag = 'internal scratch']
  %s0 = inlined_call_operand.vmem [shape: f32[16,16], index: 0, kind: input, shape index: {}]
  %s1 = inlined_call_operand.hbm [shape: f32[16,32], index: 1, kind: input, shape index: {}]
  %s2 = inlined_call_operand.vmem [shape: f32[1,32], index: 2, kind: input, shape index: {}]
  %s3 = inlined_call_operand.vmem [shape: f32[32,128], index: 3, kind: input, shape index: {}]
  %s4 = inlined_call_operand.vmem [shape: f32[1,128], index: 4, kind: input, shape index: {}]
  %s5 = inlined_call_operand.vmem [shape: f32[16,8], index: 5, kind: output, shape index: {}]
  %s6 = sld [smem:[#allocation0]]
  $region57: #{policy_forward.1} parent=0
    _
  %s8 = ssub.s32 1, %s6
  %s9 = scalar_select 0, %s8, %s6
  $region1: #{policy_forward.1} parent=0
    #allocation2 [shape = 'u8[8192]{0}', space=vmem, size = 0x2000, scoped, tag = 'input window, operand 1, single buffered']
    #allocation3 [shape = 's32[2]{0}', space=sflag, size = 0x8, scoped, tag = 'scoped memory for policy_forward.1']
    %10 = vsyncpa [#allocation3], 0
    loop: start=0, step=1, limit=4
    $region2: #{policy_forward.1} parent=1 // loop_pre_header
      _
    $region3: #{policy_forward.1} parent=1 // loop_header
      %s12 = sphi 0, %s16
      %p13 = scmp.ge.s32.totalorder %s12, 4
      %s22 = sphi 0, %s24
      %s25 = sphi 0, %s22
      %s26 = sphi 0, %s25
      %s42 = sphi 0, %s26
      %s46 = sphi 0, %s46
      %s48 = sphi 0, %s46
      %s49 = sphi 0, %s48
      %s63 = sphi 0, %s49
      %s67 = sphi 0, %s67
      %s69 = sphi 0, %s67
      %s70 = sphi 0, %s69
      %s84 = sphi 0, %s70
      %s88 = sphi 0, %s88
      %s90 = sphi 0, %s88
      %s91 = sphi 0, %s90
      %s105 = sphi 0, %s91
      %s109 = sphi 0, %s109
      %s111 = sphi 0, %s109
      %s112 = sphi 0, %s111
      %s126 = sphi 0, %s112
      %s132 = sphi 0, %s134
      %s135 = sphi 0, %s132
      %s136 = sphi 0, %s135
      %s152 = sphi 0, %s136
    $region4: #{policy_forward.1} parent=1 // loop_header_branch
      %15 = sbr.rel (%p13) target = $region8
    $region5: #{policy_forward.1} parent=1 // loop_body
      %s17 = ssub.s32 %s12, 1
      %s18 = ssub.s32 %s12, 2
      %s19 = sadd.s32 %s12, 1
      %s20 = ssub.s32 %s12, %s19
      %p21 = scmp.eq.s32.totalorder %s20, 0
      %s23 = sadd.s32 %s22, 1
      %s24 = scalar_select %p21, %s22, %s23
      %p27 = pneg %p21
      %p28 = scmp.eq.s32.totalorder %s12, 1
      %p29 = por %p27, %p28
      %p30 = scmp.ne.s32.totalorder %s22, %s25
      %p31 = scmp.eq.s32.totalorder %s12, 0
      %p32 = por %p30, %p31
      %p33 = scmp.ne.s32.totalorder %s22, %s25
      %p34 = scmp.eq.s32.totalorder %s17, 1
      %p35 = por %p33, %p34
      %p36 = scmp.ne.s32.totalorder %s25, %s26
      %p37 = scmp.eq.s32.totalorder %s17, 0
      %p38 = por %p36, %p37
      %p39 = scmp.ne.s32.totalorder %s25, %s26
      %p40 = scmp.eq.s32.totalorder %s18, 1
      %p41 = por %p39, %p40
      %p43 = scmp.ne.s32.totalorder %s26, %s42
      %p44 = scmp.eq.s32.totalorder %s18, 0
      %p45 = por %p43, %p44
      %s47 = sadd.s32 %s46, 1
      %p50 = scmp.eq.s32.totalorder %s12, 1
      %p51 = scmp.ne.s32.totalorder %s46, %s48
      %p52 = scmp.eq.s32.totalorder %s12, 0
      %p53 = por %p51, %p52
      %p54 = scmp.ne.s32.totalorder %s46, %s48
      %p55 = scmp.eq.s32.totalorder %s17, 1
      %p56 = por %p54, %p55
      %p57 = scmp.ne.s32.totalorder %s48, %s49
      %p58 = scmp.eq.s32.totalorder %s17, 0
      %p59 = por %p57, %p58
      %p60 = scmp.ne.s32.totalorder %s48, %s49
      %p61 = scmp.eq.s32.totalorder %s18, 1
      %p62 = por %p60, %p61
      %p64 = scmp.ne.s32.totalorder %s49, %s63
      %p65 = scmp.eq.s32.totalorder %s18, 0
      %p66 = por %p64, %p65
      %s68 = sadd.s32 %s67, 1
      %p71 = scmp.eq.s32.totalorder %s12, 1
      %p72 = scmp.ne.s32.totalorder %s67, %s69
      %p73 = scmp.eq.s32.totalorder %s12, 0
      %p74 = por %p72, %p73
      %p75 = scmp.ne.s32.totalorder %s67, %s69
      %p76 = scmp.eq.s32.totalorder %s17, 1
      %p77 = por %p75, %p76
      %p78 = scmp.ne.s32.totalorder %s69, %s70
      %p79 = scmp.eq.s32.totalorder %s17, 0
      %p80 = por %p78, %p79
      %p81 = scmp.ne.s32.totalorder %s69, %s70
      %p82 = scmp.eq.s32.totalorder %s18, 1
      %p83 = por %p81, %p82
      %p85 = scmp.ne.s32.totalorder %s70, %s84
      %p86 = scmp.eq.s32.totalorder %s18, 0
      %p87 = por %p85, %p86
      %s89 = sadd.s32 %s88, 1
      %p92 = scmp.eq.s32.totalorder %s12, 1
      %p93 = scmp.ne.s32.totalorder %s88, %s90
      %p94 = scmp.eq.s32.totalorder %s12, 0
      %p95 = por %p93, %p94
      %p96 = scmp.ne.s32.totalorder %s88, %s90
      %p97 = scmp.eq.s32.totalorder %s17, 1
      %p98 = por %p96, %p97
      %p99 = scmp.ne.s32.totalorder %s90, %s91
      %p100 = scmp.eq.s32.totalorder %s17, 0
      %p101 = por %p99, %p100
      %p102 = scmp.ne.s32.totalorder %s90, %s91
      %p103 = scmp.eq.s32.totalorder %s18, 1
      %p104 = por %p102, %p103
      %p106 = scmp.ne.s32.totalorder %s91, %s105
      %p107 = scmp.eq.s32.totalorder %s18, 0
      %p108 = por %p106, %p107
      %s110 = sadd.s32 %s109, 1
      %p113 = scmp.eq.s32.totalorder %s12, 1
      %p114 = scmp.ne.s32.totalorder %s109, %s111
      %p115 = scmp.eq.s32.totalorder %s12, 0
      %p116 = por %p114, %p115
      %p117 = scmp.ne.s32.totalorder %s109, %s111
      %p118 = scmp.eq.s32.totalorder %s17, 1
      %p119 = por %p117, %p118
      %p120 = scmp.ne.s32.totalorder %s111, %s112
      %p121 = scmp.eq.s32.totalorder %s17, 0
      %p122 = por %p120, %p121
      %p123 = scmp.ne.s32.totalorder %s111, %s112
      %p124 = scmp.eq.s32.totalorder %s18, 1
      %p125 = por %p123, %p124
      %p127 = scmp.ne.s32.totalorder %s112, %s126
      %p128 = scmp.eq.s32.totalorder %s18, 0
      %p129 = por %p127, %p128
      %s130 = ssub.s32 %s12, %s19
      %p131 = scmp.eq.s32.totalorder %s130, 0
      %s133 = sadd.s32 %s132, 1
      %s134 = scalar_select %p131, %s132, %s133
      %p137 = pneg %p131
      %p138 = scmp.eq.s32.totalorder %s12, 1
      %p139 = por %p137, %p138
      %p140 = scmp.ne.s32.totalorder %s132, %s135
      %p141 = scmp.eq.s32.totalorder %s12, 0
      %p142 = por %p140, %p141
      %p143 = scmp.ne.s32.totalorder %s132, %s135
      %p144 = scmp.eq.s32.totalorder %s17, 1
      %p145 = por %p143, %p144
      %p146 = scmp.ne.s32.totalorder %s135, %s136
      %p147 = scmp.eq.s32.totalorder %s17, 0
      %p148 = por %p146, %p147
      %p149 = scmp.ne.s32.totalorder %s135, %s136
      %p150 = scmp.eq.s32.totalorder %s18, 1
      %p151 = por %p149, %p150
      %p153 = scmp.ne.s32.totalorder %s136, %s152
      %p154 = scmp.eq.s32.totalorder %s18, 0
      %p155 = por %p153, %p154
      %p156 = scmp.le.s32.totalorder 1, %s12
      %p157 = scmp.lt.s32.totalorder %s12, 3
      %p158 = pnand %p156, %p157
      %p159 = pneg %p158
      // Predicated region
      $region9: #{policy_forward.1} parent=5 // pred_check
        _
      $region10: #{policy_forward.1} parent=5 // pred_check_branch
        %161 = sbr.rel (%p158) target = $region12
      $region11: #{policy_forward.1} parent=5 // pred_region
        %s162 = ssub.s32 %s12, 1
        // Predicated region
        $region13: #{policy_forward.1} parent=11 // pred_check
          %p163 = pneg %p59
        $region14: #{policy_forward.1} parent=11 // pred_check_branch
          %165 = sbr.rel (%p163) target = $region16
        $region15: #{policy_forward.1} parent=11 // pred_region
          %s167 = ssub.s32 256, 256
          %168 = vsyncadd [#allocation3], %s167
          %s169 = sshll.u32 [#allocation2], 4
          %s170 = int_to_ptr.vmem [resolvable:$true] %s169
          %175 = dma.hbm_to_vmem [thread:$0]  %s1, 256, %s170, [#allocation3], 128, 128, 8
        $region16: #{policy_forward.1} parent=11 // pred_fallthru
          _
        // Predicated region
        $region17: #{policy_forward.1} parent=11 // pred_check
          %p176 = pneg %p80
        $region18: #{policy_forward.1} parent=11 // pred_check_branch
          %178 = sbr.rel (%p176) target = $region20
        $region19: #{policy_forward.1} parent=11 // pred_region
          _
        $region20: #{policy_forward.1} parent=11 // pred_fallthru
          _
        // Predicated region
        $region21: #{policy_forward.1} parent=11 // pred_check
          %p179 = pneg %p101
        $region22: #{policy_forward.1} parent=11 // pred_check_branch
          %181 = sbr.rel (%p179) target = $region24
        $region23: #{policy_forward.1} parent=11 // pred_region
          _
        $region24: #{policy_forward.1} parent=11 // pred_fallthru
          _
        // Predicated region
        $region25: #{policy_forward.1} parent=11 // pred_check
          %p182 = pneg %p122
        $region26: #{policy_forward.1} parent=11 // pred_check_branch
          %184 = sbr.rel (%p182) target = $region28
        $region27: #{policy_forward.1} parent=11 // pred_region
          _
        $region28: #{policy_forward.1} parent=11 // pred_fallthru
          _
      $region12: #{policy_forward.1} parent=5 // pred_fallthru
        _
      %p185 = scmp.lt.s32.totalorder %s12, 2
      // Predicated region
      $region29: #{policy_forward.1} parent=5 // pred_check
        %p186 = pneg %p185
      $region30: #{policy_forward.1} parent=5 // pred_check_branch
        %188 = sbr.rel (%p186) target = $region32
      $region31: #{policy_forward.1} parent=5 // pred_region
        // Predicated region
        $region33: #{policy_forward.1} parent=31 // pred_check
          %p189 = pneg %p32
        $region34: #{policy_forward.1} parent=31 // pred_check_branch
          %191 = sbr.rel (%p189) target = $region36
        $region35: #{policy_forward.1} parent=31 // pred_region
          %p192 = scmp.lt.s32.totalorder %s12, 1
          %s193 = scalar_select %p192, %s12, 1
          %s194 = smul.addr %s193, 8
          %s195 = scalar_lea.vmem %s0, %s194
        $region36: #{policy_forward.1} parent=31 // pred_fallthru
          _
      $region32: #{policy_forward.1} parent=5 // pred_fallthru
        _
      %p196 = scmp.le.s32.totalorder 1, %s12
      %p197 = scmp.lt.s32.totalorder %s12, 3
      %p198 = pnand %p196, %p197
      %p199 = pneg %p198
      // Predicated region
      $region37: #{policy_forward.1} parent=5 // pred_check
        _
      $region38: #{policy_forward.1} parent=5 // pred_check_branch
        %201 = sbr.rel (%p198) target = $region40
      $region39: #{policy_forward.1} parent=5 // pred_region
        %s202 = ssub.s32 %s12, 1
        // Predicated region
        $region41: #{policy_forward.1} parent=39 // pred_check
          %p203 = pneg %p59
        $region42: #{policy_forward.1} parent=39 // pred_check_branch
          %205 = sbr.rel (%p203) target = $region44
        $region43: #{policy_forward.1} parent=39 // pred_region
          %206 = dma.done [#allocation3], 256
        $region44: #{policy_forward.1} parent=39 // pred_fallthru
          _
        %p207 = scmp.lt.s32.totalorder %s17, 1
        %s208 = scalar_select %p207, %s17, 1
        %s209 = smul.addr %s208, 8
        %s210 = scalar_lea.vmem %s0, %s209
        %p211 = pneg %p38
        %p212 = pneg %p35
        %p213 = pneg %p59
        %p214 = pneg %p56
        %p215 = pneg %p80
        %p216 = pneg %p77
        %p217 = pneg %p101
        %p218 = pneg %p98
        %p219 = pneg %p122
        %p220 = pneg %p119
        %p221 = pneg %p148
        %p222 = pneg %p145
        %p223 = scmp.lt.s32.totalorder %s17, 1
        %s224 = scalar_select %p223, %s17, 1
        %s225 = smul.addr %s224, 8
        %s226 = scalar_lea.vmem %s5, %s225
        %p227 = scmp.lt.s32.totalorder %s17, 1
        %s228 = scalar_select %p227, %s17, 1
        %s229 = smul.addr %s228, 8
        %s230 = scalar_lea.vmem %s0, %s229
        %p231 = scmp.lt.s32.totalorder %s17, 1
        %s232 = scalar_select %p231, %s17, 1
        %s233 = smul.addr %s232, 8
        %s234 = scalar_lea.vmem %s5, %s233
        %v235 = vld [vmem:[%s230] sm:$0xff]
        %v236 = vld [vmem:[#allocation2] sm:$0xff]
        %v237 = vld [vmem:[#allocation2 + $0x8] sm:$0xff]
        %v238 = vld [vmem:[%s2] sm:$0x1]
        %v240 = vlaneseq
        %v241 = vshrl.u32 %v240, 7
        %v242 = vsub.s32 0, %v241
        %v243 = vrot.slane %v238, %v242
        %vm245 = vcmask 130048
        %v247 = vsel %vm245, %v235, 0
        %249 = vmatprep.subr.mxu0 0.0
        %250 = vmatpush1.msra.mxu0 %v236
        %251 = vmatprep.subr.mxu0 0.0
        %252 = vmatpush1.msra.mxu0 %v237
        %253 = vmatprep.subr.mxu0 0.0
        %254 = vmatpush1.msra.mxu0 0.0
        %255 = vmatprep.subr.mxu0 0.0
        %256 = vmatpush1.msra.mxu0 0.0
        %257 = vmatprep.subr.mxu0 0.0
        %258 = vmatpush1.msra.mxu0 0.0
        %259 = vmatprep.subr.mxu0 0.0
        %260 = vmatpush1.msra.mxu0 0.0
        %261 = vmatprep.subr.mxu0 0.0
        %262 = vmatpush1.msra.mxu0 0.0
        %263 = vmatprep.subr.mxu0 0.0
        %264 = vmatpush1.msra.mxu0 0.0
        %265 = vmatprep.subr.mxu0 0.0
        %266 = vmatpush1.msra.mxu0 0.0
        %267 = vmatprep.subr.mxu0 0.0
        %268 = vmatpush1.msra.mxu0 0.0
        %269 = vmatprep.subr.mxu0 0.0
        %270 = vmatpush1.msra.mxu0 0.0
        %271 = vmatprep.subr.mxu0 0.0
        %272 = vmatpush1.msra.mxu0 0.0
        %273 = vmatprep.subr.mxu0 0.0
        %274 = vmatpush1.msra.mxu0 0.0
        %275 = vmatprep.subr.mxu0 0.0
        %276 = vmatpush1.msra.mxu0 0.0
        %277 = vmatprep.subr.mxu0 0.0
        %278 = vmatpush1.msra.mxu0 0.0
        %279 = vmatprep.subr.mxu0 0.0
        %280 = vmatpush1.msra.mxu0 0.0
        %281 = vmatprep.subr.mxu0 0.0
        %282 = vmatpush1.msra.mxu0 0.0
        %283 = vmatprep.subr.mxu0 0.0
        %284 = vmatpush1.msra.mxu0 0.0
        %285 = vmatprep.subr.mxu0 0.0
        %286 = vmatpush1.msra.mxu0 0.0
        %287 = vmatprep.subr.mxu0 0.0
        %288 = vmatpush1.msra.mxu0 0.0
        %289 = vmatprep.subr.mxu0 0.0
        %290 = vmatpush1.msra.mxu0 0.0
        %291 = vmatprep.subr.mxu0 0.0
        %292 = vmatpush1.msra.mxu0 0.0
        %293 = vmatprep.subr.mxu0 0.0
        %294 = vmatpush1.msra.mxu0 0.0
        %295 = vmatprep.subr.mxu0 0.0
        %296 = vmatpush1.msra.mxu0 0.0
        %297 = vmatprep.subr.mxu0 0.0
        %298 = vmatpush1.msra.mxu0 0.0
        %299 = vmatprep.subr.mxu0 0.0
        %300 = vmatpush1.msra.mxu0 0.0
        %301 = vmatprep.subr.mxu0 0.0
        %302 = vmatpush1.msra.mxu0 0.0
        %303 = vmatprep.subr.mxu0 0.0
        %304 = vmatpush1.msra.mxu0 0.0
        %305 = vmatprep.subr.mxu0 0.0
        %306 = vmatpush1.msra.mxu0 0.0
        %307 = vmatprep.subr.mxu0 0.0
        %308 = vmatpush1.msra.mxu0 0.0
        %309 = vmatprep.subr.mxu0 0.0
        %310 = vmatpush1.msra.mxu0 0.0
        %311 = vmatprep.subr.mxu0 0.0
        %312 = vmatpush1.msra.mxu0 0.0
        %313 = vmatprep.mubr.f32.mxu0 0.0
        %314 = vmatmul.mubr.f32.gmra.mrb[0].mxu0 %v247
        %v315 = vpop.f32.mrb[0].mxu0
        %v316 = vadd.f32 %v243, %v315
        %v317 = vpop.f32.mrb[0].mxu0
        %318 = vdwg.mxu0
        %v319 = vmax.f32 %v316, 0.0
        %v320 = vld [vmem:[%s3] sm:$0xff]
        %v321 = vld [vmem:[%s3 + $0x8] sm:$0xff]
        %v322 = vld [vmem:[%s3 + $0x10] sm:$0xff]
        %v323 = vld [vmem:[%s3 + $0x18] sm:$0xff]
        %vm324 = vcmask 261120
        %v326 = vsel %vm324, %v319, 0
        %328 = vmatprep.subr.mxu0 0.0
        %329 = vmatpush1.msra.mxu0 %v320
        %330 = vmatprep.subr.mxu0 0.0
        %331 = vmatpush1.msra.mxu0 %v321
        %332 = vmatprep.subr.mxu0 0.0
        %333 = vmatpush1.msra.mxu0 %v322
        %334 = vmatprep.subr.mxu0 0.0
        %335 = vmatpush1.msra.mxu0 %v323
        %336 = vmatprep.subr.mxu0 0.0
        %337 = vmatpush1.msra.mxu0 0.0
        %338 = vmatprep.subr.mxu0 0.0
        %339 = vmatpush1.msra.mxu0 0.0
        %340 = vmatprep.subr.mxu0 0.0
        %341 = vmatpush1.msra.mxu0 0.0
        %342 = vmatprep.subr.mxu0 0.0
        %343 = vmatpush1.msra.mxu0 0.0
        %344 = vmatprep.subr.mxu0 0.0
        %345 = vmatpush1.msra.mxu0 0.0
        %346 = vmatprep.subr.mxu0 0.0
        %347 = vmatpush1.msra.mxu0 0.0
        %348 = vmatprep.subr.mxu0 0.0
        %349 = vmatpush1.msra.mxu0 0.0
        %350 = vmatprep.subr.mxu0 0.0
        %351 = vmatpush1.msra.mxu0 0.0
        %352 = vmatprep.subr.mxu0 0.0
        %353 = vmatpush1.msra.mxu0 0.0
        %354 = vmatprep.subr.mxu0 0.0
        %355 = vmatpush1.msra.mxu0 0.0
        %356 = vmatprep.subr.mxu0 0.0
        %357 = vmatpush1.msra.mxu0 0.0
        %358 = vmatprep.subr.mxu0 0.0
        %359 = vmatpush1.msra.mxu0 0.0
        %360 = vmatprep.subr.mxu0 0.0
        %361 = vmatpush1.msra.mxu0 0.0
        %362 = vmatprep.subr.mxu0 0.0
        %363 = vmatpush1.msra.mxu0 0.0
        %364 = vmatprep.subr.mxu0 0.0
        %365 = vmatpush1.msra.mxu0 0.0
        %366 = vmatprep.subr.mxu0 0.0
        %367 = vmatpush1.msra.mxu0 0.0
        %368 = vmatprep.subr.mxu0 0.0
        %369 = vmatpush1.msra.mxu0 0.0
        %370 = vmatprep.subr.mxu0 0.0
        %371 = vmatpush1.msra.mxu0 0.0
        %372 = vmatprep.subr.mxu0 0.0
        %373 = vmatpush1.msra.mxu0 0.0
        %374 = vmatprep.subr.mxu0 0.0
        %375 = vmatpush1.msra.mxu0 0.0
        %376 = vmatprep.subr.mxu0 0.0
        %377 = vmatpush1.msra.mxu0 0.0
        %378 = vmatprep.subr.mxu0 0.0
        %379 = vmatpush1.msra.mxu0 0.0
        %380 = vmatprep.subr.mxu0 0.0
        %381 = vmatpush1.msra.mxu0 0.0
        %382 = vmatprep.subr.mxu0 0.0
        %383 = vmatpush1.msra.mxu0 0.0
        %384 = vmatprep.subr.mxu0 0.0
        %385 = vmatpush1.msra.mxu0 0.0
        %386 = vmatprep.subr.mxu0 0.0
        %387 = vmatpush1.msra.mxu0 0.0
        %388 = vmatprep.subr.mxu0 0.0
        %389 = vmatpush1.msra.mxu0 0.0
        %390 = vmatprep.subr.mxu0 0.0
        %391 = vmatpush1.msra.mxu0 0.0
        %392 = vmatprep.mubr.f32.mxu0 0.0
        %393 = vmatmul.mubr.f32.gmra.mrb[0].mxu0 %v326
        %v394 = vpop.f32.mrb[0].mxu0
        %v395 = vadd.f32 0.0, %v394
        %v396 = vpop.f32.mrb[0].mxu0
        %397 = vdwg.mxu0
        %v398 = vld [vmem:[%s4] sm:$0x1]
        %v400 = vlaneseq
        %v401 = vshrl.u32 %v400, 7
        %v402 = vsub.s32 0, %v401
        %v403 = vrot.slane %v398, %v402
        %v405 = vadd.f32 %v395, %v403
        %v406 = vlaneseq
        %v407 = vand.u32 %v406, 127
        %vm408 = vcmp.ge.s32.totalorder %v407, 4
        %vm409 = vcmp.gt.f32.partialorder %v405, 20.0
        %v410 = vmin.f32 %v405, 20.0
        %v411 = vmul.f32 %v410, 1.442695
        %v412 = vpow.pop %v411
        %v413 = vadd.f32 %v412, 1.0
        %v414 = vlog2.pop %v413
        %v415 = vmul.f32 %v414, 0.6931472
        %v416 = vmul.f32 -0.5, %v412
        %v417 = vadd.f32 %v416, 1.0
        %v418 = vmul.f32 %v417, %v412
        %v419 = vand.u32 2147483647, %v412
        %vm420 = vcmp.lt.f32.partialorder %v419, 0.0004427343
        %v421 = vsel %vm420, %v418, %v415
        %v422 = vsel %vm409, %v405, %v421
        %v423 = vsel %vm408, %v422, %v405
        %vm424 = vcmask 64512
        %425 = vst.msk [vmem:[%s234] sm:$0xff] %vm424, %v423
        %p426 = scmp.lt.s32.totalorder %s17, 1
        %s427 = scalar_select %p426, %s17, 1
        %s428 = smul.addr %s427, 8
        %s429 = scalar_lea.vmem %s5, %s428
        // Predicated region
        $region45: #{policy_forward.1} parent=39 // pred_check
          %p430 = pneg %p145
        $region46: #{policy_forward.1} parent=39 // pred_check_branch
          %432 = sbr.rel (%p430) target = $region48
        $region47: #{policy_forward.1} parent=39 // pred_region
          _
        $region48: #{policy_forward.1} parent=39 // pred_fallthru
          _
      $region40: #{policy_forward.1} parent=5 // pred_fallthru
        _
      %p433 = scmp.le.s32.totalorder 2, %s12
      // Predicated region
      $region49: #{policy_forward.1} parent=5 // pred_check
        %p434 = pneg %p433
      $region50: #{policy_forward.1} parent=5 // pred_check_branch
        %436 = sbr.rel (%p434) target = $region52
      $region51: #{policy_forward.1} parent=5 // pred_region
        %s437 = ssub.s32 %s12, 2
        // Predicated region
        $region53: #{policy_forward.1} parent=51 // pred_check
          %p438 = pneg %p151
        $region54: #{policy_forward.1} parent=51 // pred_check_branch
          %440 = sbr.rel (%p438) target = $region56
        $region55: #{policy_forward.1} parent=51 // pred_region
          %p441 = scmp.lt.s32.totalorder %s18, 1
          %s442 = scalar_select %p441, %s18, 1
          %s443 = smul.addr %s442, 8
          %s444 = scalar_lea.vmem %s5, %s443
        $region56: #{policy_forward.1} parent=51 // pred_fallthru
          _
      $region52: #{policy_forward.1} parent=5 // pred_fallthru
        _
    $region6: #{policy_forward.1} parent=1 // loop_footer
      %s16 = sadd.s32 1, %s12
    $region7: #{policy_forward.1} parent=1 // loop_footer_branch
      %11 = sbr.rel target = $region3
    $region8: #{policy_forward.1} parent=1 // loop_exit
      _
    %445 = vsyncpa [#allocation3], 1
    %s446 = scalar_lea.sflag [#allocation3], 1
    %447 = vsyncpa %s446, 1

</llo_original>
